<compile_context>
chip_gen: v6e
topology: v6e:2x2x1
jax: 0.10.0
libtpu: 0.0.40
codegen_flags: <defaults>
</compile_context>

<pallas_src>
import jax
import jax.numpy as jnp
from jax import lax
from jax.experimental import pallas as pl
from jax.experimental.pallas import tpu as pltpu

_LANE = 128
_SUBLANE = 8
_K_ALIGN = 1024   # tk multiple of 1024 => (tk//128, 128) row blocks satisfy (8, 128)


def _round_up(x, m):
    return ((x + m - 1) // m) * m


def _nll_num_kernel(dur_col_ref, dur_row_ref, exp_row_ref, out_ref, num_acc):
    """num[j] = sum_i exp(risk_i - rmax) * [dur_i >= dur_j] for one (tq x tk) tile
    of the implicit N x N risk-set mask. Grid = (q row tiles, k risk-set tiles)."""
    k = pl.program_id(1)
    nk = pl.num_programs(1)
    tq = dur_col_ref.shape[0]
    n_groups = dur_row_ref.shape[0]          # tk // 128, static

    # Loop-invariant lane broadcast of the per-row durations (hoisted once).
    dur_col_b = jnp.broadcast_to(dur_col_ref[...], (tq, _LANE))       # (tq, 128)

    def body(g, acc):
        dur_g = dur_row_ref[pl.ds(g, 1), :]                           # (1, 128)
        exp_g = exp_row_ref[pl.ds(g, 1), :]                           # (1, 128)
        cmp = dur_g >= dur_col_b                                      # (tq, 128)
        return acc + jnp.where(cmp, exp_g, jnp.float32(0.0))          # 3 VPU ops/elem

    # Register-resident accumulation over this k step's tk columns; the VMEM
    # scratch is written once per grid step (not once per 128-lane group).
    local = lax.fori_loop(0, n_groups, body,
                          jnp.zeros((tq, _LANE), jnp.float32), unroll=8)

    @pl.when(k == 0)
    def _():
        num_acc[...] = local

    @pl.when(k > 0)
    def _():
        num_acc[...] += local

    @pl.when(k == nk - 1)
    def _():
        # Single cross-lane (XLU) reduce per row tile, deferred to the last k step.
        # TODO(synk): (tq, 1) output lowers to masked sublane stores; volume is one
        # tiny store per q tile so the lane-dense-output rewrite is skipped.
        out_ref[...] = jnp.sum(num_acc[...], axis=-1, keepdims=True)


def negative_log_likelihood(risk_pred, duration, event, model_params=None,
                            weight_decay=0.0, order=2,
                            block_q=128, block_k=8192):
    """Cox partial-likelihood NLL (DeepSurv). risk_pred/duration/event: (N, 1)."""
    n = risk_pred.shape[0]
    risk = risk_pred.astype(jnp.float32).reshape(-1)
    dur = duration.astype(jnp.float32).reshape(-1)
    evt = event.astype(jnp.float32).reshape(-1)

    # q (loss-row) tile: sublane multiple; capped so the "parallel" axis has >= 2
    # tiles for moderate N (keeps both v7x TensorCores busy).
    tq = max(_SUBLANE, min(block_q, _round_up(pl.cdiv(n, 2), _SUBLANE)))
    npad_q = _round_up(n, tq)
    # k (risk-set) tile: multiple of 1024 so the reshaped (tk//128, 128) row blocks
    # satisfy the (8, 128) constraint; large tk amortizes per-grid-step overhead.
    tk = max(_K_ALIGN, min(_round_up(block_k, _K_ALIGN), _round_up(n, _K_ALIGN)))
    npad_k = _round_up(n, tk)
    grid = (npad_q // tq, npad_k // tk)

    # Log-sum-exp stabilization + hoisted exponentials (single O(N) XLA pass).
    rmax = jnp.max(risk)
    exp_vals = jnp.exp(risk - rmax)

    # Column (sublane) copy of durations, padded along j; padded rows are sliced
    # off in the epilogue so their pad value is irrelevant.
    dur_col = jnp.zeros((npad_q, 1), jnp.float32).at[:n, 0].set(dur)
    # Row (lane) copies, padded along i with exp == 0 so padded risk-set columns
    # contribute exactly 0 to the numerator regardless of the compare result.
    dur_row = (jnp.zeros((npad_k,), jnp.float32).at[:n].set(dur)
               .reshape(npad_k // _LANE, _LANE))
    exp_row = (jnp.zeros((npad_k,), jnp.float32).at[:n].set(exp_vals)
               .reshape(npad_k // _LANE, _LANE))

    num_out = pl.pallas_call(
        _nll_num_kernel,
        out_shape=jax.ShapeDtypeStruct((npad_q, 1), jnp.float32),
        grid_spec=pltpu.PrefetchScalarGridSpec(
            num_scalar_prefetch=0,
            grid=grid,
            in_specs=[
                pl.BlockSpec((tq, 1), lambda q, k: (q, 0)),               # dur, rows j
                pl.BlockSpec((tk // _LANE, _LANE), lambda q, k: (k, 0)),  # dur, risk set i
                pl.BlockSpec((tk // _LANE, _LANE), lambda q, k: (k, 0)),  # exp(risk-rmax), i
            ],
            out_specs=pl.BlockSpec((tq, 1), lambda q, k: (q, 0)),
            scratch_shapes=[pltpu.VMEM((tq, _LANE), jnp.float32)],        # num accumulator
        ),
        compiler_params=pltpu.CompilerParams(
            dimension_semantics=("parallel", "arbitrary")),
    )(dur_col, dur_row, exp_row)

    # O(N log N) / O(N) epilogue in XLA:
    #   den[j] = #{i : dur_i >= dur_j}  (exact integer count via sort + searchsorted)
    #   log_loss[j] = log(num_j) - log(den_j) + rmax
    #   loss = -sum((risk - log_loss) * event) / sum(event)
    num = num_out[:n, 0]
    sorted_dur = jnp.sort(dur)
    den = (jnp.float32(n)
           - jnp.searchsorted(sorted_dur, dur, side="left").astype(jnp.float32))
    log_loss = jnp.log(num) - jnp.log(den) + rmax
    neg = -jnp.sum((risk - log_loss) * evt) / jnp.sum(evt)

    # Regularization(order=2, weight_decay=0): plain-JAX glue; contributes exactly 0
    # in the reference module (L2_reg = 0).
    l2 = jnp.float32(0.0)
    if model_params is not None:
        for name, w in model_params.items():
            if "weight" in name:
                l2 = l2 + jnp.sum(jnp.abs(w) ** order) ** (1.0 / order)
    return neg + jnp.float32(weight_decay) * l2

# TODO(synk): for very large N, a sort-by-duration + reversed-cumsum O(N log N)
# reformulation removes the O(N^2) masked numerator entirely; kept O(N^2)-tiled here
# to mirror the module's math directly.


def _nll_reference(risk_pred, duration, event):
    """Pure-JAX transcription of the PyTorch forward (for verification)."""
    risk = risk_pred.astype(jnp.float32)
    dur = duration.astype(jnp.float32)
    evt = event.astype(jnp.float32)
    mask = (dur.T - dur <= 0).astype(jnp.float32)        # mask[i, j]
    log_loss = jnp.sum(jnp.exp(risk) * mask, axis=0) / jnp.sum(mask, axis=0)
    log_loss = jnp.log(log_loss).reshape(-1, 1)
    return -jnp.sum((risk - log_loss) * evt) / jnp.sum(evt)


if __name__ == "__main__":
    key = jax.random.PRNGKey(0)

    def make_inputs(k, n):
        k1, k2, k3 = jax.random.split(k, 3)
        risk_pred = jax.random.normal(k1, (n, 1), dtype=jnp.float32)
        duration = jax.random.uniform(k2, (n, 1), dtype=jnp.float32,
                                      minval=0.0, maxval=10.0)
        event = (jax.random.uniform(k3, (n, 1)) > 0.4).astype(jnp.float32)
        event = event.at[0, 0].set(1.0)     # ensure sum(event) > 0
        return risk_pred, duration, event

    kA, kB, kC, k4, k5 = jax.random.split(key, 5)

    # Synthetic DeepSurv-style params; only "weight" entries feed the
    # (zero-weighted) regularization term.
    model_params = {
        "fc1.weight": jax.random.normal(k4, (32, 16), dtype=jnp.float32) * 0.1,
        "fc1.bias": jnp.zeros((32,), jnp.float32),
        "fc2.weight": jax.random.normal(k5, (1, 32), dtype=jnp.float32) * 0.1,
        "fc2.bias": jnp.zeros((1,), jnp.float32),
    }

    # Small case: single-tile grid.
    r8, d8, e8 = make_inputs(kA, 8)
    loss8 = negative_log_likelihood(r8, d8, e8, model_params=model_params,
                                    weight_decay=0.0, order=2)
    jax.block_until_ready(loss8)
    ref8 = _nll_reference(r8, d8, e8)
    assert jnp.allclose(loss8, ref8, rtol=1e-4, atol=1e-4), (loss8, ref8)

    # Multiple q tiles with default blocks; padding on both axes.
    r300, d300, e300 = make_inputs(kB, 300)
    loss300 = negative_log_likelihood(r300, d300, e300, model_params=model_params,
                                      weight_decay=0.0, order=2)
    jax.block_until_ready(loss300)
    ref300 = _nll_reference(r300, d300, e300)
    assert jnp.allclose(loss300, ref300, rtol=1e-4, atol=1e-4), (loss300, ref300)

    # Multiple k tiles: exercises the cross-k accumulator path (grid_k == 2).
    r1200, d1200, e1200 = make_inputs(kC, 1200)
    loss1200 = negative_log_likelihood(r1200, d1200, e1200,
                                       model_params=model_params,
                                       weight_decay=0.0, order=2,
                                       block_q=128, block_k=1024)
    jax.block_until_ready(loss1200)
    ref1200 = _nll_reference(r1200, d1200, e1200)
    assert jnp.allclose(loss1200, ref1200, rtol=1e-4, atol=1e-4), (loss1200, ref1200)

    print("KERNEL_OK")
</pallas_src>

<mosaic_0001>
module attributes {stable_mosaic.version = 11 : i64} {
  func.func @_nll_num_kernel(%arg0: i32, %arg1: i32, %arg2: memref<8x1xf32, #tpu.memory_space<vmem>>, %arg3: memref<8x128xf32, #tpu.memory_space<vmem>>, %arg4: memref<8x128xf32, #tpu.memory_space<vmem>>, %arg5: memref<8x1xf32, #tpu.memory_space<vmem>>, %arg6: memref<8x128xf32, #tpu.memory_space<vmem>>) attributes {dimension_semantics = [#tpu.dimension_semantics<parallel>, #tpu.dimension_semantics<arbitrary>], iteration_bounds = array<i64: 1, 1>, scalar_prefetch = 0 : i64, scratch_operands = 1 : i64, tpu.core_type = #tpu.core_type<tc>, window_params = [{transform_indices = @transform_0, window_bounds = array<i64: 8, 1>}, {transform_indices = @transform_1, window_bounds = array<i64: 8, 128>}, {transform_indices = @transform_2, window_bounds = array<i64: 8, 128>}, {transform_indices = @transform_3, window_bounds = array<i64: 8, 1>}]} {
    %c0 = arith.constant 0 : index
    %c0_0 = arith.constant 0 : index
    %0 = vector.load %arg2[%c0, %c0_0] : memref<8x1xf32, #tpu.memory_space<vmem>>, vector<8x1xf32>
    %1 = vector.shape_cast %0 : vector<8x1xf32> to vector<8x1xf32>
    %2 = vector.broadcast %1 : vector<8x1xf32> to vector<8x128xf32>
    %cst = arith.constant 0.000000e+00 : f32
    %3 = vector.broadcast %cst : f32 to vector<8x128xf32>
    %c0_i32 = arith.constant 0 : i32
    %4 = arith.index_cast %c0_i32 : i32 to index
    %c0_1 = arith.constant 0 : index
    %5 = vector.load %arg3[%4, %c0_1] : memref<8x128xf32, #tpu.memory_space<vmem>>, vector<1x128xf32>
    %6 = arith.index_cast %c0_i32 : i32 to index
    %c0_2 = arith.constant 0 : index
    %7 = vector.load %arg4[%6, %c0_2] : memref<8x128xf32, #tpu.memory_space<vmem>>, vector<1x128xf32>
    %8 = vector.broadcast %5 : vector<1x128xf32> to vector<8x128xf32>
    %9 = arith.cmpf oge, %8, %2 : vector<8x128xf32>
    %cst_3 = arith.constant 0.000000e+00 : f32
    %10 = vector.shape_cast %7 : vector<1x128xf32> to vector<1x128xf32>
    %11 = vector.broadcast %10 : vector<1x128xf32> to vector<8x128xf32>
    %12 = vector.broadcast %cst_3 : f32 to vector<8x128xf32>
    %13 = arith.select %9, %11, %12 : vector<8x128xi1>, vector<8x128xf32>
    %14 = arith.addf %3, %13 : vector<8x128xf32>
    %c1_i32 = arith.constant 1 : i32
    %15 = arith.index_cast %c1_i32 : i32 to index
    %c0_4 = arith.constant 0 : index
    %16 = vector.load %arg3[%15, %c0_4] : memref<8x128xf32, #tpu.memory_space<vmem>>, vector<1x128xf32>
    %17 = arith.index_cast %c1_i32 : i32 to index
    %c0_5 = arith.constant 0 : index
    %18 = vector.load %arg4[%17, %c0_5] : memref<8x128xf32, #tpu.memory_space<vmem>>, vector<1x128xf32>
    %19 = vector.broadcast %16 : vector<1x128xf32> to vector<8x128xf32>
    %20 = arith.cmpf oge, %19, %2 : vector<8x128xf32>
    %cst_6 = arith.constant 0.000000e+00 : f32
    %21 = vector.shape_cast %18 : vector<1x128xf32> to vector<1x128xf32>
    %22 = vector.broadcast %21 : vector<1x128xf32> to vector<8x128xf32>
    %23 = vector.broadcast %cst_6 : f32 to vector<8x128xf32>
    %24 = arith.select %20, %22, %23 : vector<8x128xi1>, vector<8x128xf32>
    %25 = arith.addf %14, %24 : vector<8x128xf32>
    %c2_i32 = arith.constant 2 : i32
    %26 = arith.index_cast %c2_i32 : i32 to index
    %c0_7 = arith.constant 0 : index
    %27 = vector.load %arg3[%26, %c0_7] : memref<8x128xf32, #tpu.memory_space<vmem>>, vector<1x128xf32>
    %28 = arith.index_cast %c2_i32 : i32 to index
    %c0_8 = arith.constant 0 : index
    %29 = vector.load %arg4[%28, %c0_8] : memref<8x128xf32, #tpu.memory_space<vmem>>, vector<1x128xf32>
    %30 = vector.broadcast %27 : vector<1x128xf32> to vector<8x128xf32>
    %31 = arith.cmpf oge, %30, %2 : vector<8x128xf32>
    %cst_9 = arith.constant 0.000000e+00 : f32
    %32 = vector.shape_cast %29 : vector<1x128xf32> to vector<1x128xf32>
    %33 = vector.broadcast %32 : vector<1x128xf32> to vector<8x128xf32>
    %34 = vector.broadcast %cst_9 : f32 to vector<8x128xf32>
    %35 = arith.select %31, %33, %34 : vector<8x128xi1>, vector<8x128xf32>
    %36 = arith.addf %25, %35 : vector<8x128xf32>
    %c3_i32 = arith.constant 3 : i32
    %37 = arith.index_cast %c3_i32 : i32 to index
    %c0_10 = arith.constant 0 : index
    %38 = vector.load %arg3[%37, %c0_10] : memref<8x128xf32, #tpu.memory_space<vmem>>, vector<1x128xf32>
    %39 = arith.index_cast %c3_i32 : i32 to index
    %c0_11 = arith.constant 0 : index
    %40 = vector.load %arg4[%39, %c0_11] : memref<8x128xf32, #tpu.memory_space<vmem>>, vector<1x128xf32>
    %41 = vector.broadcast %38 : vector<1x128xf32> to vector<8x128xf32>
    %42 = arith.cmpf oge, %41, %2 : vector<8x128xf32>
    %cst_12 = arith.constant 0.000000e+00 : f32
    %43 = vector.shape_cast %40 : vector<1x128xf32> to vector<1x128xf32>
    %44 = vector.broadcast %43 : vector<1x128xf32> to vector<8x128xf32>
    %45 = vector.broadcast %cst_12 : f32 to vector<8x128xf32>
    %46 = arith.select %42, %44, %45 : vector<8x128xi1>, vector<8x128xf32>
    %47 = arith.addf %36, %46 : vector<8x128xf32>
    %c4_i32 = arith.constant 4 : i32
    %48 = arith.index_cast %c4_i32 : i32 to index
    %c0_13 = arith.constant 0 : index
    %49 = vector.load %arg3[%48, %c0_13] : memref<8x128xf32, #tpu.memory_space<vmem>>, vector<1x128xf32>
    %50 = arith.index_cast %c4_i32 : i32 to index
    %c0_14 = arith.constant 0 : index
    %51 = vector.load %arg4[%50, %c0_14] : memref<8x128xf32, #tpu.memory_space<vmem>>, vector<1x128xf32>
    %52 = vector.broadcast %49 : vector<1x128xf32> to vector<8x128xf32>
    %53 = arith.cmpf oge, %52, %2 : vector<8x128xf32>
    %cst_15 = arith.constant 0.000000e+00 : f32
    %54 = vector.shape_cast %51 : vector<1x128xf32> to vector<1x128xf32>
    %55 = vector.broadcast %54 : vector<1x128xf32> to vector<8x128xf32>
    %56 = vector.broadcast %cst_15 : f32 to vector<8x128xf32>
    %57 = arith.select %53, %55, %56 : vector<8x128xi1>, vector<8x128xf32>
    %58 = arith.addf %47, %57 : vector<8x128xf32>
    %c5_i32 = arith.constant 5 : i32
    %59 = arith.index_cast %c5_i32 : i32 to index
    %c0_16 = arith.constant 0 : index
    %60 = vector.load %arg3[%59, %c0_16] : memref<8x128xf32, #tpu.memory_space<vmem>>, vector<1x128xf32>
    %61 = arith.index_cast %c5_i32 : i32 to index
    %c0_17 = arith.constant 0 : index
    %62 = vector.load %arg4[%61, %c0_17] : memref<8x128xf32, #tpu.memory_space<vmem>>, vector<1x128xf32>
    %63 = vector.broadcast %60 : vector<1x128xf32> to vector<8x128xf32>
    %64 = arith.cmpf oge, %63, %2 : vector<8x128xf32>
    %cst_18 = arith.constant 0.000000e+00 : f32
    %65 = vector.shape_cast %62 : vector<1x128xf32> to vector<1x128xf32>
    %66 = vector.broadcast %65 : vector<1x128xf32> to vector<8x128xf32>
    %67 = vector.broadcast %cst_18 : f32 to vector<8x128xf32>
    %68 = arith.select %64, %66, %67 : vector<8x128xi1>, vector<8x128xf32>
    %69 = arith.addf %58, %68 : vector<8x128xf32>
    %c6_i32 = arith.constant 6 : i32
    %70 = arith.index_cast %c6_i32 : i32 to index
    %c0_19 = arith.constant 0 : index
    %71 = vector.load %arg3[%70, %c0_19] : memref<8x128xf32, #tpu.memory_space<vmem>>, vector<1x128xf32>
    %72 = arith.index_cast %c6_i32 : i32 to index
    %c0_20 = arith.constant 0 : index
    %73 = vector.load %arg4[%72, %c0_20] : memref<8x128xf32, #tpu.memory_space<vmem>>, vector<1x128xf32>
    %74 = vector.broadcast %71 : vector<1x128xf32> to vector<8x128xf32>
    %75 = arith.cmpf oge, %74, %2 : vector<8x128xf32>
    %cst_21 = arith.constant 0.000000e+00 : f32
    %76 = vector.shape_cast %73 : vector<1x128xf32> to vector<1x128xf32>
    %77 = vector.broadcast %76 : vector<1x128xf32> to vector<8x128xf32>
    %78 = vector.broadcast %cst_21 : f32 to vector<8x128xf32>
    %79 = arith.select %75, %77, %78 : vector<8x128xi1>, vector<8x128xf32>
    %80 = arith.addf %69, %79 : vector<8x128xf32>
    %c7_i32 = arith.constant 7 : i32
    %81 = arith.index_cast %c7_i32 : i32 to index
    %c0_22 = arith.constant 0 : index
    %82 = vector.load %arg3[%81, %c0_22] : memref<8x128xf32, #tpu.memory_space<vmem>>, vector<1x128xf32>
    %83 = arith.index_cast %c7_i32 : i32 to index
    %c0_23 = arith.constant 0 : index
    %84 = vector.load %arg4[%83, %c0_23] : memref<8x128xf32, #tpu.memory_space<vmem>>, vector<1x128xf32>
    %85 = vector.broadcast %82 : vector<1x128xf32> to vector<8x128xf32>
    %86 = arith.cmpf oge, %85, %2 : vector<8x128xf32>
    %cst_24 = arith.constant 0.000000e+00 : f32
    %87 = vector.shape_cast %84 : vector<1x128xf32> to vector<1x128xf32>
    %88 = vector.broadcast %87 : vector<1x128xf32> to vector<8x128xf32>
    %89 = vector.broadcast %cst_24 : f32 to vector<8x128xf32>
    %90 = arith.select %86, %88, %89 : vector<8x128xi1>, vector<8x128xf32>
    %91 = arith.addf %80, %90 : vector<8x128xf32>
    %c8_i32 = arith.constant 8 : i32
    %c0_i32_25 = arith.constant 0 : i32
    %92 = arith.cmpi eq, %arg1, %c0_i32_25 : i32
    %93 = arith.extui %92 : i1 to i32
    %c0_i32_26 = arith.constant 0 : i32
    %94 = arith.cmpi ne, %93, %c0_i32_26 : i32
    scf.if %94 {
      %c0_31 = arith.constant 0 : index
      %c0_32 = arith.constant 0 : index
      %101 = vector.load %arg6[%c0_31, %c0_32] : memref<8x128xf32, #tpu.memory_space<vmem>>, vector<8x128xf32>
      tpu.vector_store %arg6[%c0_31, %c0_32], %91 {strides = array<i32>} : memref<8x128xf32, #tpu.memory_space<vmem>>, vector<8x128xf32>,
    } else {
    }
    %c0_i32_27 = arith.constant 0 : i32
    %95 = arith.cmpi sgt, %arg1, %c0_i32_27 : i32
    %96 = arith.extui %95 : i1 to i32
    %c0_i32_28 = arith.constant 0 : i32
    %97 = arith.cmpi ne, %96, %c0_i32_28 : i32
    scf.if %97 {
      %c0_31 = arith.constant 0 : index
      %c0_32 = arith.constant 0 : index
      %101 = vector.load %arg6[%c0_31, %c0_32] : memref<8x128xf32, #tpu.memory_space<vmem>>, vector<8x128xf32>
      %102 = arith.addf %101, %91 : vector<8x128xf32>
      %c0_33 = arith.constant 0 : index
      %c0_34 = arith.constant 0 : index
      %103 = vector.load %arg6[%c0_33, %c0_34] : memref<8x128xf32, #tpu.memory_space<vmem>>, vector<8x128xf32>
      tpu.vector_store %arg6[%c0_33, %c0_34], %102 {strides = array<i32>} : memref<8x128xf32, #tpu.memory_space<vmem>>, vector<8x128xf32>,
    } else {
    }
    %c0_i32_29 = arith.constant 0 : i32
    %98 = arith.cmpi eq, %arg1, %c0_i32_29 : i32
    %99 = arith.extui %98 : i1 to i32
    %c0_i32_30 = arith.constant 0 : i32
    %100 = arith.cmpi ne, %99, %c0_i32_30 : i32
    scf.if %100 {
      %c0_31 = arith.constant 0 : index
      %c0_32 = arith.constant 0 : index
      %101 = vector.load %arg6[%c0_31, %c0_32] : memref<8x128xf32, #tpu.memory_space<vmem>>, vector<8x128xf32>
      %cst_33 = arith.constant dense<0.000000e+00> : vector<8xf32>
      %102 = vector.multi_reduction <add>, %101, %cst_33 [1] : vector<8x128xf32> to vector<8xf32>
      %103 = vector.shape_cast %102 : vector<8xf32> to vector<8x1xf32>
      %c0_34 = arith.constant 0 : index
      %c0_35 = arith.constant 0 : index
      %104 = vector.load %arg5[%c0_34, %c0_35] : memref<8x1xf32, #tpu.memory_space<vmem>>, vector<8x1xf32>
      tpu.vector_store %arg5[%c0_34, %c0_35], %103 {strides = array<i32>} : memref<8x1xf32, #tpu.memory_space<vmem>>, vector<8x1xf32>,
    } else {
    }
    return
  }
  func.func @transform_0(%arg0: i32, %arg1: i32) -> (i32, i32) {
    %c0_i32 = arith.constant 0 : i32
    %c0_i32_0 = arith.constant 0 : i32
    return %arg0, %c0_i32 : i32, i32
  }
  func.func @transform_1(%arg0: i32, %arg1: i32) -> (i32, i32) {
    %c0_i32 = arith.constant 0 : i32
    %c0_i32_0 = arith.constant 0 : i32
    return %arg1, %c0_i32 : i32, i32
  }
  func.func @transform_2(%arg0: i32, %arg1: i32) -> (i32, i32) {
    %c0_i32 = arith.constant 0 : i32
    %c0_i32_0 = arith.constant 0 : i32
    return %arg1, %c0_i32 : i32, i32
  }
  func.func @transform_3(%arg0: i32, %arg1: i32) -> (i32, i32) {
    %c0_i32 = arith.constant 0 : i32
    %c0_i32_0 = arith.constant 0 : i32
    return %arg0, %c0_i32 : i32, i32
  }
}

</mosaic_0001>

<llo_original>
// kernel: tpu_custom_call.1
$region0: #{tpu_custom_call.1}
  #allocation0 [shape = 'u32[]', space=smem, size = 0x4, offset = 0x4, fixed_abs, tag = 'smem constant byte address 0x4 - core index']
  #allocation1 [shape = 'u32[144,128]{1,0:T(1,128)}', space=vmem, size = 0x12000, scoped, tag = 'internal scratch']
  #allocation2 [shape = 'f32[8,128]{1,0:T(8,128)}', space=vmem, size = 0x1000, scoped, tag = 'scratch operand']
  %s0 = inlined_call_operand.vmem [shape: f32[8,1], index: 0, kind: input, shape index: {}]
  %s1 = inlined_call_operand.vmem [shape: f32[8,128], index: 1, kind: input, shape index: {}]
  %s2 = inlined_call_operand.hbm [shape: f32[8,128], index: 2, kind: input, shape index: {}]
  %s3 = inlined_call_operand.vmem [shape: f32[8,1], index: 3, kind: output, shape index: {}]
  %s4 = sld [smem:[#allocation0]]
  $region38: #{tpu_custom_call.1} parent=0
    _
  %s6 = ssub.s32 1, %s4
  %s7 = scalar_select 0, %s6, %s4
  $region1: #{tpu_custom_call.1} parent=0
    #allocation3 [shape = 'u8[4096]{0}', space=vmem, size = 0x1000, scoped, tag = 'input window, operand 2, single buffered']
    #allocation4 [shape = 's32[1]{0}', space=sflag, size = 0x4, scoped, tag = 'scoped memory for tpu_custom_call.1']
    %8 = vsyncpa [#allocation4], 0
    // Predicated region
    $region2: #{tpu_custom_call.1} parent=1 // pred_check
      _
    $region3: #{tpu_custom_call.1} parent=1 // pred_check_branch
      %10 = sbr.rel (0) target = $region5
    $region4: #{tpu_custom_call.1} parent=1 // pred_region
      _
    $region5: #{tpu_custom_call.1} parent=1 // pred_fallthru
      _
    // Predicated region
    $region6: #{tpu_custom_call.1} parent=1 // pred_check
      _
    $region7: #{tpu_custom_call.1} parent=1 // pred_check_branch
      %12 = sbr.rel (0) target = $region9
    $region8: #{tpu_custom_call.1} parent=1 // pred_region
      _
    $region9: #{tpu_custom_call.1} parent=1 // pred_fallthru
      _
    // Predicated region
    $region10: #{tpu_custom_call.1} parent=1 // pred_check
      _
    $region11: #{tpu_custom_call.1} parent=1 // pred_check_branch
      %14 = sbr.rel (0) target = $region13
    $region12: #{tpu_custom_call.1} parent=1 // pred_region
      %s16 = ssub.s32 128, 128
      %17 = vsyncadd [#allocation4], %s16
      %s19 = sshll.u32 [#allocation3], 4
      %s20 = int_to_ptr.vmem [resolvable:$true] %s19
      %22 = dma.hbm_to_vmem [thread:$0]  %s2, 128, %s20, [#allocation4]
    $region13: #{tpu_custom_call.1} parent=1 // pred_fallthru
      _
    // Predicated region
    $region14: #{tpu_custom_call.1} parent=1 // pred_check
      _
    $region15: #{tpu_custom_call.1} parent=1 // pred_check_branch
      %24 = sbr.rel (0) target = $region17
    $region16: #{tpu_custom_call.1} parent=1 // pred_region
      %25 = dma.done [#allocation4], 128
    $region17: #{tpu_custom_call.1} parent=1 // pred_fallthru
      _
    %v26 = vld [vmem:[%s0] sm:$0xff]
    %28 = vset.pattern.permute.xlu0 0
    %29 = vperm.xlu0 %28, %v26
    %v30 = vpop.permute.xlu0 %29
    %v32 = vld [vmem:[%s1] sm:$0x1]
    %v33 = vld [vmem:[#allocation3] sm:$0x1]
    %v34 = vlaneseq
    %v35 = vshrl.u32 %v34, 7
    %v36 = vsub.s32 0, %v35
    %v37 = vrot.slane %v32, %v36
    %vm38 = vcmp.ge.f32.partialorder %v37, %v30
    %v39 = vlaneseq
    %v40 = vshrl.u32 %v39, 7
    %v41 = vsub.s32 0, %v40
    %v42 = vrot.slane %v33, %v41
    %v43 = vsel %vm38, %v42, 0.0
    %v44 = vadd.f32 %v43, 0.0
    %v45 = vld [vmem:[%s1 + $0x1] sm:$0x1]
    %v46 = vld [vmem:[#allocation3 + $0x1] sm:$0x1]
    %v47 = vlaneseq
    %v48 = vshrl.u32 %v47, 7
    %v49 = vsub.s32 0, %v48
    %v50 = vrot.slane %v45, %v49
    %vm51 = vcmp.ge.f32.partialorder %v50, %v30
    %v52 = vlaneseq
    %v53 = vshrl.u32 %v52, 7
    %v54 = vsub.s32 0, %v53
    %v55 = vrot.slane %v46, %v54
    %v56 = vsel %vm51, %v55, 0.0
    %v57 = vadd.f32 %v44, %v56
    %v58 = vld [vmem:[%s1 + $0x2] sm:$0x1]
    %v59 = vld [vmem:[#allocation3 + $0x2] sm:$0x1]
    %v60 = vlaneseq
    %v61 = vshrl.u32 %v60, 7
    %v62 = vsub.s32 0, %v61
    %v63 = vrot.slane %v58, %v62
    %vm64 = vcmp.ge.f32.partialorder %v63, %v30
    %v65 = vlaneseq
    %v66 = vshrl.u32 %v65, 7
    %v67 = vsub.s32 0, %v66
    %v68 = vrot.slane %v59, %v67
    %v69 = vsel %vm64, %v68, 0.0
    %v70 = vadd.f32 %v57, %v69
    %v71 = vld [vmem:[%s1 + $0x3] sm:$0x1]
    %v72 = vld [vmem:[#allocation3 + $0x3] sm:$0x1]
    %v73 = vlaneseq
    %v74 = vshrl.u32 %v73, 7
    %v75 = vsub.s32 0, %v74
    %v76 = vrot.slane %v71, %v75
    %vm77 = vcmp.ge.f32.partialorder %v76, %v30
    %v78 = vlaneseq
    %v79 = vshrl.u32 %v78, 7
    %v80 = vsub.s32 0, %v79
    %v81 = vrot.slane %v72, %v80
    %v82 = vsel %vm77, %v81, 0.0
    %v83 = vadd.f32 %v70, %v82
    %v84 = vld [vmem:[%s1 + $0x4] sm:$0x1]
    %v85 = vld [vmem:[#allocation3 + $0x4] sm:$0x1]
    %v86 = vlaneseq
    %v87 = vshrl.u32 %v86, 7
    %v88 = vsub.s32 0, %v87
    %v89 = vrot.slane %v84, %v88
    %vm90 = vcmp.ge.f32.partialorder %v89, %v30
    %v91 = vlaneseq
    %v92 = vshrl.u32 %v91, 7
    %v93 = vsub.s32 0, %v92
    %v94 = vrot.slane %v85, %v93
    %v95 = vsel %vm90, %v94, 0.0
    %v96 = vadd.f32 %v83, %v95
    %v97 = vld [vmem:[%s1 + $0x5] sm:$0x1]
    %v98 = vld [vmem:[#allocation3 + $0x5] sm:$0x1]
    %v99 = vlaneseq
    %v100 = vshrl.u32 %v99, 7
    %v101 = vsub.s32 0, %v100
    %v102 = vrot.slane %v97, %v101
    %vm103 = vcmp.ge.f32.partialorder %v102, %v30
    %v104 = vlaneseq
    %v105 = vshrl.u32 %v104, 7
    %v106 = vsub.s32 0, %v105
    %v107 = vrot.slane %v98, %v106
    %v108 = vsel %vm103, %v107, 0.0
    %v109 = vadd.f32 %v96, %v108
    %v110 = vld [vmem:[%s1 + $0x6] sm:$0x1]
    %v111 = vld [vmem:[#allocation3 + $0x6] sm:$0x1]
    %v112 = vlaneseq
    %v113 = vshrl.u32 %v112, 7
    %v114 = vsub.s32 0, %v113
    %v115 = vrot.slane %v110, %v114
    %vm116 = vcmp.ge.f32.partialorder %v115, %v30
    %v117 = vlaneseq
    %v118 = vshrl.u32 %v117, 7
    %v119 = vsub.s32 0, %v118
    %v120 = vrot.slane %v111, %v119
    %v121 = vsel %vm116, %v120, 0.0
    %v122 = vadd.f32 %v109, %v121
    %v123 = vld [vmem:[%s1 + $0x7] sm:$0x1]
    %v124 = vld [vmem:[#allocation3 + $0x7] sm:$0x1]
    %v125 = vlaneseq
    %v126 = vshrl.u32 %v125, 7
    %v127 = vsub.s32 0, %v126
    %v128 = vrot.slane %v123, %v127
    %vm129 = vcmp.ge.f32.partialorder %v128, %v30
    %v130 = vlaneseq
    %v131 = vshrl.u32 %v130, 7
    %v132 = vsub.s32 0, %v131
    %v133 = vrot.slane %v124, %v132
    %v134 = vsel %vm129, %v133, 0.0
    %v135 = vadd.f32 %v122, %v134
    %p136 = scmp.eq.s32.totalorder 0, 0
    // Predicated region
    $region18: #{tpu_custom_call.1} parent=1 // pred_check
      %p137 = pneg %p136
    $region19: #{tpu_custom_call.1} parent=1 // pred_check_branch
      %139 = sbr.rel (%p137) target = $region21
    $region20: #{tpu_custom_call.1} parent=1 // pred_region
      %140 = vst [vmem:[#allocation2] sm:$0xff] %v135
    $region21: #{tpu_custom_call.1} parent=1 // pred_fallthru
      _
    %p141 = scmp.gt.s32.totalorder 0, 0
    // Predicated region
    $region22: #{tpu_custom_call.1} parent=1 // pred_check
      %p142 = pneg %p141
    $region23: #{tpu_custom_call.1} parent=1 // pred_check_branch
      %144 = sbr.rel (%p142) target = $region25
    $region24: #{tpu_custom_call.1} parent=1 // pred_region
      %v145 = vld [vmem:[#allocation2] sm:$0xff]
      %v146 = vadd.f32 %v145, %v135
      %147 = vst [vmem:[#allocation2] sm:$0xff] %v146
    $region25: #{tpu_custom_call.1} parent=1 // pred_fallthru
      _
    // Predicated region
    $region26: #{tpu_custom_call.1} parent=1 // pred_check
      %p148 = pneg %p136
    $region27: #{tpu_custom_call.1} parent=1 // pred_check_branch
      %150 = sbr.rel (%p148) target = $region29
    $region28: #{tpu_custom_call.1} parent=1 // pred_region
      %v151 = vld [vmem:[#allocation2] sm:$0xff]
      %152 = vadd.xlane.f32.xlu0 %v151
      %v153 = vpop.xlane.xlu0 %152
      %vm154 = vcmask 7168
      %155 = vst.msk [vmem:[%s3] sm:$0xff] %vm154, %v153
    $region29: #{tpu_custom_call.1} parent=1 // pred_fallthru
      _
    // Predicated region
    $region30: #{tpu_custom_call.1} parent=1 // pred_check
      _
    $region31: #{tpu_custom_call.1} parent=1 // pred_check_branch
      %157 = sbr.rel (0) target = $region33
    $region32: #{tpu_custom_call.1} parent=1 // pred_region
      _
    $region33: #{tpu_custom_call.1} parent=1 // pred_fallthru
      _
    // Predicated region
    $region34: #{tpu_custom_call.1} parent=1 // pred_check
      _
    $region35: #{tpu_custom_call.1} parent=1 // pred_check_branch
      %159 = sbr.rel (0) target = $region37
    $region36: #{tpu_custom_call.1} parent=1 // pred_region
      _
    $region37: #{tpu_custom_call.1} parent=1 // pred_fallthru
      _
    %160 = vsyncpa [#allocation4], 1

</llo_original>
